<compile_context>
chip_gen: v7x
topology: tpu7x:2x2x1
jax: 0.10.0
libtpu: 0.0.40
codegen_flags: <defaults>
</compile_context>

<pallas_src>
import functools
import math

import jax
import jax.numpy as jnp
from jax.experimental import pallas as pl
from jax.experimental.pallas import tpu as pltpu


def _round_up(n: int, m: int) -> int:
    return ((n + m - 1) // m) * m


def _highway_kernel(x_ref, w_ref, b_ref, o_ref, *, dp):
    # x_ref: (TM, Dp) activations in their native dtype (also the residual path)
    # w_ref: (Dp, 2*Dp) bf16  == [W1.T | W2.T] column-concatenated, zero padded
    # b_ref: (1, 2*Dp)  f32   == [b1 | b2]
    # o_ref: (TM, Dp) output, same dtype as x
    x = x_ref[...]
    xf = x.astype(jnp.float32)                                 # f32 residual
    z = jnp.dot(x.astype(w_ref.dtype), w_ref[...],
                preferred_element_type=jnp.float32) + b_ref[...]
    x1 = z[:, :dp]                                             # lane-aligned (dp % 128 == 0)
    g = jax.nn.sigmoid(z[:, dp:])
    # g*relu(x1) + (1-g)*x  ==  x + g*(relu(x1) - x)           (one fewer vmul)
    o_ref[...] = (xf + g * (jnp.maximum(x1, 0.0) - xf)).astype(o_ref.dtype)


def prepare_highway_params(w1_t, b1, w2_t, b2, *, weight_dtype=jnp.bfloat16):
    """One-time weight prep (module init): fuse W1/W2 into one lane-aligned operand.

    w1_t / w2_t are laid out so that y = x @ w_t + b (i.e. PyTorch weight.T).
    Returns (w_cat: (Dp, 2*Dp) weight_dtype, b_cat: (1, 2*Dp) f32), Dp = round_up(D, 128).
    """
    d = w1_t.shape[0]
    dp = _round_up(d, 128)
    w_cat = jnp.zeros((dp, 2 * dp), jnp.float32)
    w_cat = w_cat.at[:d, :d].set(w1_t).at[:d, dp:dp + d].set(w2_t)
    b_cat = jnp.zeros((1, 2 * dp), jnp.float32)
    b_cat = b_cat.at[0, :d].set(b1).at[0, dp:dp + d].set(b2)
    return w_cat.astype(weight_dtype), b_cat


def _choose_tm(n, block_rows, row_bytes):
    """Row-tile size: MXU-aligned, >= 2 tiles when possible, VMEM-bounded."""
    if n <= 8:
        return n                                  # block == full row extent (allowed)
    tm = min(block_rows, _round_up(n, 8))
    # At least two row tiles so a v7x megacore can split the grid over its 2 TCs.
    tm = min(tm, _round_up((n + 1) // 2, 8))
    # Keep the double-buffered x + out tiles within ~24 MiB of VMEM.
    vmem_cap = max(8, ((24 << 20) // (2 * row_bytes)) // 8 * 8)
    tm = min(tm, vmem_cap)
    # MXU-friendly rounding (128 covers v5e; 256 covers v6e/v7x passes).
    if tm >= 256:
        tm -= tm % 256
    elif tm >= 128:
        tm -= tm % 128
    else:
        tm = _round_up(tm, 8)
    return tm


def highway_forward(x, w_cat, b_cat, *, block_rows=512):
    """Fused HighwayNetwork forward: x (..., D) -> y (..., D), dtype preserved."""
    orig_shape = x.shape
    d = orig_shape[-1]
    dp = w_cat.shape[0]
    assert w_cat.shape == (dp, 2 * dp) and dp == _round_up(d, 128)

    n = math.prod(orig_shape[:-1])
    x2d = x.reshape(n, d)
    if dp != d:                                   # lane-align feature dim only if needed
        x2d = jnp.pad(x2d, ((0, 0), (0, dp - d)))

    itemsize = x.dtype.itemsize
    tm = _choose_tm(n, block_rows, dp * 2 * itemsize)
    grid = (pl.cdiv(n, tm),)                      # ragged last row tile masked by Pallas

    # VMEM budget: x/out tiles double-buffered + resident weight + bias (+ headroom).
    est = (4 * tm * dp * itemsize
           + 2 * dp * 2 * dp * jnp.dtype(w_cat.dtype).itemsize
           + 2 * 2 * dp * 4)
    vmem_limit = int(min(max(2 * est + (4 << 20), 32 << 20), 64 << 20))

    out = pl.pallas_call(
        functools.partial(_highway_kernel, dp=dp),
        out_shape=jax.ShapeDtypeStruct((n, dp), x.dtype),
        grid=grid,
        in_specs=[
            pl.BlockSpec((tm, dp), lambda i: (i, 0)),
            # Constant blocks: single-buffer (no wasted second VMEM copy).
            pl.BlockSpec((dp, 2 * dp), lambda i: (0, 0),
                         pipeline_mode=pl.Buffered(1)),
            pl.BlockSpec((1, 2 * dp), lambda i: (0, 0),
                         pipeline_mode=pl.Buffered(1)),
        ],
        out_specs=pl.BlockSpec((tm, dp), lambda i: (i, 0)),
        compiler_params=pltpu.CompilerParams(
            dimension_semantics=("parallel",),    # v7x: shard row tiles over 2 TCs
            vmem_limit_bytes=vmem_limit),
    )(x2d, w_cat, b_cat)

    if dp != d:
        out = out[:, :d]
    return out.reshape(orig_shape)


if __name__ == "__main__":
    # Small shapes consistent with the module: x of shape (batch, seq, size).
    size = 128
    B, T = 2, 64

    key = jax.random.PRNGKey(0)
    kx, k1, k2, kb2 = jax.random.split(key, 4)
    x = jax.random.normal(kx, (B, T, size), jnp.float32)
    # PyTorch Linear computes y = x @ W.T + b; store the transposed weights directly.
    w1_t = 0.1 * jax.random.normal(k1, (size, size), jnp.float32)
    b1 = jnp.zeros((size,), jnp.float32)          # W1.bias.data.fill_(0.)
    w2_t = 0.1 * jax.random.normal(k2, (size, size), jnp.float32)
    b2 = 0.1 * jax.random.normal(kb2, (size,), jnp.float32)

    # One-time weight prep (module init) -- NOT in the per-call hot path.
    w_cat, b_cat = prepare_highway_params(w1_t, b1, w2_t, b2)

    y = highway_forward(x, w_cat, b_cat)          # N=128 rows -> grid=(2,) tiles of 64
    y = jax.block_until_ready(y)

    # Pure-JAX f32 reference; bf16 matmul inside the kernel -> loose tolerance.
    x1_ref = x @ w1_t + b1
    x2_ref = x @ w2_t + b2
    g_ref = jax.nn.sigmoid(x2_ref)
    ref = g_ref * jnp.maximum(x1_ref, 0.0) + (1.0 - g_ref) * x

    assert y.shape == (B, T, size) and y.dtype == x.dtype
    assert bool(jnp.all(jnp.isfinite(y)))
    max_err = float(jnp.max(jnp.abs(y - ref)))
    assert max_err < 1e-1, max_err
    print("KERNEL_OK")
</pallas_src>

<mosaic_0001>
module attributes {stable_mosaic.version = 11 : i64} {
  func.func @_highway_kernel(%arg0: i32, %arg1: memref<64x128xf32, #tpu.memory_space<vmem>>, %arg2: memref<128x256xbf16, #tpu.memory_space<vmem>>, %arg3: memref<1x256xf32, #tpu.memory_space<vmem>>, %arg4: memref<64x128xf32, #tpu.memory_space<vmem>>) attributes {dimension_semantics = [#tpu.dimension_semantics<parallel>], iteration_bounds = array<i64: 2>, scalar_prefetch = 0 : i64, scratch_operands = 0 : i64, tpu.core_type = #tpu.core_type<tc>, window_params = [{transform_indices = @transform_0, window_bounds = array<i64: 64, 128>}, {pipeline_mode = #tpu.pipeline_mode<synchronous>, transform_indices = @transform_1, window_bounds = array<i64: 128, 256>}, {pipeline_mode = #tpu.pipeline_mode<synchronous>, transform_indices = @transform_2, window_bounds = array<i64: 1, 256>}, {transform_indices = @transform_3, window_bounds = array<i64: 64, 128>}]} {
    %c0 = arith.constant 0 : index
    %c0_0 = arith.constant 0 : index
    %0 = vector.load %arg1[%c0, %c0_0] : memref<64x128xf32, #tpu.memory_space<vmem>>, vector<64x128xf32>
    %1 = arith.truncf %0 : vector<64x128xf32> to vector<64x128xbf16>
    %c0_1 = arith.constant 0 : index
    %c0_2 = arith.constant 0 : index
    %2 = vector.load %arg2[%c0_1, %c0_2] : memref<128x256xbf16, #tpu.memory_space<vmem>>, vector<128x256xbf16>
    %cst = arith.constant dense<0.000000e+00> : vector<64x256xf32>
    %3 = tpu.matmul %1, %2, %cst {dimension_numbers = #tpu.dot_dimension_numbers<[1], [0], [0], [1], [0, 0, 1, 1], [], []>} : vector<64x128xbf16>, vector<128x256xbf16>, vector<64x256xf32> -> vector<64x256xf32>
    %c0_3 = arith.constant 0 : index
    %c0_4 = arith.constant 0 : index
    %4 = vector.load %arg3[%c0_3, %c0_4] : memref<1x256xf32, #tpu.memory_space<vmem>>, vector<1x256xf32>
    %5 = vector.broadcast %4 : vector<1x256xf32> to vector<64x256xf32>
    %6 = arith.addf %3, %5 : vector<64x256xf32>
    %7 = vector.extract_strided_slice %6 {offsets = [0, 0], sizes = [64, 128], strides = [1, 1]} : vector<64x256xf32> to vector<64x128xf32>
    %8 = vector.extract_strided_slice %6 {offsets = [0, 128], sizes = [64, 128], strides = [1, 1]} : vector<64x256xf32> to vector<64x128xf32>
    %9 = arith.negf %8 : vector<64x128xf32>
    %10 = math.exp %9 : vector<64x128xf32>
    %cst_5 = arith.constant 1.000000e+00 : f32
    %11 = vector.broadcast %cst_5 : f32 to vector<64x128xf32>
    %12 = arith.addf %11, %10 : vector<64x128xf32>
    %13 = arith.divf %11, %12 : vector<64x128xf32>
    %cst_6 = arith.constant 0.000000e+00 : f32
    %14 = vector.broadcast %cst_6 : f32 to vector<64x128xf32>
    %15 = arith.maximumf %7, %14 : vector<64x128xf32>
    %16 = arith.subf %15, %0 : vector<64x128xf32>
    %17 = arith.mulf %13, %16 : vector<64x128xf32>
    %18 = arith.addf %0, %17 : vector<64x128xf32>
    %c0_7 = arith.constant 0 : index
    %c0_8 = arith.constant 0 : index
    %19 = vector.load %arg4[%c0_7, %c0_8] : memref<64x128xf32, #tpu.memory_space<vmem>>, vector<64x128xf32>
    tpu.vector_store %arg4[%c0_7, %c0_8], %18 {strides = array<i32>} : memref<64x128xf32, #tpu.memory_space<vmem>>, vector<64x128xf32>,
    return
  }
  func.func @transform_0(%arg0: i32) -> (i32, i32) {
    %c0_i32 = arith.constant 0 : i32
    %c0_i32_0 = arith.constant 0 : i32
    return %arg0, %c0_i32 : i32, i32
  }
  func.func @transform_1(%arg0: i32) -> (i32, i32) {
    %c0_i32 = arith.constant 0 : i32
    %c0_i32_0 = arith.constant 0 : i32
    %c0_i32_1 = arith.constant 0 : i32
    return %c0_i32, %c0_i32_0 : i32, i32
  }
  func.func @transform_2(%arg0: i32) -> (i32, i32) {
    %c0_i32 = arith.constant 0 : i32
    %c0_i32_0 = arith.constant 0 : i32
    %c0_i32_1 = arith.constant 0 : i32
    return %c0_i32, %c0_i32_0 : i32, i32
  }
  func.func @transform_3(%arg0: i32) -> (i32, i32) {
    %c0_i32 = arith.constant 0 : i32
    %c0_i32_0 = arith.constant 0 : i32
    return %arg0, %c0_i32 : i32, i32
  }
}

</mosaic_0001>

<llo_original>
// kernel: tpu_custom_call.1
$region0: #{tpu_custom_call.1}
  #allocation0 [shape = 'u32[]', space=smem, size = 0x4, offset = 0x4, fixed_abs, tag = 'smem constant byte address 0x4 - core index']
  #allocation1 [shape = 'u32[144,128]{1,0:T(1,128)}', space=vmem, size = 0x12000, scoped, tag = 'internal scratch']
  %s0 = inlined_call_operand.hbm [shape: f32[128,128], index: 0, kind: input, shape index: {}]
  %s1 = inlined_call_operand.hbm [shape: bf16[128,256], index: 1, kind: input, shape index: {}]
  %s2 = inlined_call_operand.vmem [shape: f32[1,256], index: 2, kind: input, shape index: {}]
  %s3 = inlined_call_operand.hbm [shape: f32[128,128], index: 3, kind: output, shape index: {}]
  %s4 = sld [smem:[#allocation0]]
  $region53: #{tpu_custom_call.1} parent=0
    _
  %s6 = ssub.s32 1, %s4
  %s7 = scalar_select 0, %s6, %s4
  $region1: #{tpu_custom_call.1} parent=0
    #allocation2 [shape = 'u8[65536]{0}', space=vmem, size = 0x10000, scoped, tag = 'input window, operand 0']
    #allocation3 [shape = 's32[2]{0}', space=sflag, size = 0x8, scoped, tag = 'scoped memory for tpu_custom_call.1']
    #allocation4 [shape = 's32[2]{0}', space=sflag, size = 0x8, scoped, tag = 'scoped memory for tpu_custom_call.1']
    #allocation5 [shape = 'u8[65536]{0}', space=vmem, size = 0x10000, scoped, tag = 'input window, operand 1, single buffered']
    #allocation6 [shape = 's32[1]{0}', space=sflag, size = 0x4, scoped, tag = 'scoped memory for tpu_custom_call.1']
    #allocation7 [shape = 'u8[65536]{0}', space=vmem, size = 0x10000, scoped, tag = 'output window, operand 0']
    %8 = vsyncpa [#allocation3], 0
    %s9 = scalar_lea.sflag [#allocation3], 1
    %10 = vsyncpa %s9, 0
    %11 = vsyncpa [#allocation6], 0
    %12 = vsyncpa [#allocation4], 0
    %s13 = scalar_lea.sflag [#allocation4], 1
    %14 = vsyncpa %s13, 0
    loop: start=0, step=1, limit=4
    $region2: #{tpu_custom_call.1} parent=1 // loop_pre_header
      _
    $region3: #{tpu_custom_call.1} parent=1 // loop_header
      %s16 = sphi 0, %s20
      %p17 = scmp.ge.s32.totalorder %s16, 4
      %s26 = sphi 0, %s28
      %s29 = sphi 0, %s26
      %s30 = sphi 0, %s29
      %s46 = sphi 0, %s30
      %s50 = sphi 0, %s50
      %s52 = sphi 0, %s50
      %s53 = sphi 0, %s52
      %s67 = sphi 0, %s53
      %s71 = sphi 0, %s71
      %s73 = sphi 0, %s71
      %s74 = sphi 0, %s73
      %s88 = sphi 0, %s74
      %s94 = sphi 0, %s96
      %s97 = sphi 0, %s94
      %s98 = sphi 0, %s97
      %s114 = sphi 0, %s98
    $region4: #{tpu_custom_call.1} parent=1 // loop_header_branch
      %19 = sbr.rel (%p17) target = $region8
    $region5: #{tpu_custom_call.1} parent=1 // loop_body
      %s21 = ssub.s32 %s16, 1
      %s22 = ssub.s32 %s16, 2
      %s23 = sadd.s32 %s16, 1
      %s24 = ssub.s32 %s16, %s23
      %p25 = scmp.eq.s32.totalorder %s24, 0
      %s27 = sadd.s32 %s26, 1
      %s28 = scalar_select %p25, %s26, %s27
      %p31 = pneg %p25
      %p32 = scmp.eq.s32.totalorder %s16, 1
      %p33 = por %p31, %p32
      %p34 = scmp.ne.s32.totalorder %s26, %s29
      %p35 = scmp.eq.s32.totalorder %s16, 0
      %p36 = por %p34, %p35
      %p37 = scmp.ne.s32.totalorder %s26, %s29
      %p38 = scmp.eq.s32.totalorder %s21, 1
      %p39 = por %p37, %p38
      %p40 = scmp.ne.s32.totalorder %s29, %s30
      %p41 = scmp.eq.s32.totalorder %s21, 0
      %p42 = por %p40, %p41
      %p43 = scmp.ne.s32.totalorder %s29, %s30
      %p44 = scmp.eq.s32.totalorder %s22, 1
      %p45 = por %p43, %p44
      %p47 = scmp.ne.s32.totalorder %s30, %s46
      %p48 = scmp.eq.s32.totalorder %s22, 0
      %p49 = por %p47, %p48
      %s51 = sadd.s32 %s50, 1
      %p54 = scmp.eq.s32.totalorder %s16, 1
      %p55 = scmp.ne.s32.totalorder %s50, %s52
      %p56 = scmp.eq.s32.totalorder %s16, 0
      %p57 = por %p55, %p56
      %p58 = scmp.ne.s32.totalorder %s50, %s52
      %p59 = scmp.eq.s32.totalorder %s21, 1
      %p60 = por %p58, %p59
      %p61 = scmp.ne.s32.totalorder %s52, %s53
      %p62 = scmp.eq.s32.totalorder %s21, 0
      %p63 = por %p61, %p62
      %p64 = scmp.ne.s32.totalorder %s52, %s53
      %p65 = scmp.eq.s32.totalorder %s22, 1
      %p66 = por %p64, %p65
      %p68 = scmp.ne.s32.totalorder %s53, %s67
      %p69 = scmp.eq.s32.totalorder %s22, 0
      %p70 = por %p68, %p69
      %s72 = sadd.s32 %s71, 1
      %p75 = scmp.eq.s32.totalorder %s16, 1
      %p76 = scmp.ne.s32.totalorder %s71, %s73
      %p77 = scmp.eq.s32.totalorder %s16, 0
      %p78 = por %p76, %p77
      %p79 = scmp.ne.s32.totalorder %s71, %s73
      %p80 = scmp.eq.s32.totalorder %s21, 1
      %p81 = por %p79, %p80
      %p82 = scmp.ne.s32.totalorder %s73, %s74
      %p83 = scmp.eq.s32.totalorder %s21, 0
      %p84 = por %p82, %p83
      %p85 = scmp.ne.s32.totalorder %s73, %s74
      %p86 = scmp.eq.s32.totalorder %s22, 1
      %p87 = por %p85, %p86
      %p89 = scmp.ne.s32.totalorder %s74, %s88
      %p90 = scmp.eq.s32.totalorder %s22, 0
      %p91 = por %p89, %p90
      %s92 = ssub.s32 %s16, %s23
      %p93 = scmp.eq.s32.totalorder %s92, 0
      %s95 = sadd.s32 %s94, 1
      %s96 = scalar_select %p93, %s94, %s95
      %p99 = pneg %p93
      %p100 = scmp.eq.s32.totalorder %s16, 1
      %p101 = por %p99, %p100
      %p102 = scmp.ne.s32.totalorder %s94, %s97
      %p103 = scmp.eq.s32.totalorder %s16, 0
      %p104 = por %p102, %p103
      %p105 = scmp.ne.s32.totalorder %s94, %s97
      %p106 = scmp.eq.s32.totalorder %s21, 1
      %p107 = por %p105, %p106
      %p108 = scmp.ne.s32.totalorder %s97, %s98
      %p109 = scmp.eq.s32.totalorder %s21, 0
      %p110 = por %p108, %p109
      %p111 = scmp.ne.s32.totalorder %s97, %s98
      %p112 = scmp.eq.s32.totalorder %s22, 1
      %p113 = por %p111, %p112
      %p115 = scmp.ne.s32.totalorder %s98, %s114
      %p116 = scmp.eq.s32.totalorder %s22, 0
      %p117 = por %p115, %p116
      %p118 = scmp.le.s32.totalorder 1, %s16
      %p119 = scmp.lt.s32.totalorder %s16, 3
      %p120 = pnand %p118, %p119
      %p121 = pneg %p120
      // Predicated region
      $region9: #{tpu_custom_call.1} parent=5 // pred_check
        _
      $region10: #{tpu_custom_call.1} parent=5 // pred_check_branch
        %123 = sbr.rel (%p120) target = $region12
      $region11: #{tpu_custom_call.1} parent=5 // pred_region
        %s124 = ssub.s32 %s16, 1
        // Predicated region
        $region13: #{tpu_custom_call.1} parent=11 // pred_check
          %p125 = pneg %p63
        $region14: #{tpu_custom_call.1} parent=11 // pred_check_branch
          %127 = sbr.rel (%p125) target = $region16
        $region15: #{tpu_custom_call.1} parent=11 // pred_region
          %s129 = ssub.s32 2048, 2048
          %130 = vsyncadd [#allocation6], %s129
          %s131 = sshll.u32 [#allocation5], 4
          %s132 = int_to_ptr.vmem [resolvable:$true] %s131
          %137 = dma.hbm_to_vmem [thread:$0]  %s1, 2048, %s132, [#allocation6], 128, 128, 8
        $region16: #{tpu_custom_call.1} parent=11 // pred_fallthru
          _
        // Predicated region
        $region17: #{tpu_custom_call.1} parent=11 // pred_check
          %p138 = pneg %p84
        $region18: #{tpu_custom_call.1} parent=11 // pred_check_branch
          %140 = sbr.rel (%p138) target = $region20
        $region19: #{tpu_custom_call.1} parent=11 // pred_region
          _
        $region20: #{tpu_custom_call.1} parent=11 // pred_fallthru
          _
      $region12: #{tpu_custom_call.1} parent=5 // pred_fallthru
        _
      %p141 = scmp.lt.s32.totalorder %s16, 2
      // Predicated region
      $region21: #{tpu_custom_call.1} parent=5 // pred_check
        %p142 = pneg %p141
      $region22: #{tpu_custom_call.1} parent=5 // pred_check_branch
        %144 = sbr.rel (%p142) target = $region24
      $region23: #{tpu_custom_call.1} parent=5 // pred_region
        // Predicated region
        $region25: #{tpu_custom_call.1} parent=23 // pred_check
          %p145 = pneg %p36
        $region26: #{tpu_custom_call.1} parent=23 // pred_check_branch
          %147 = sbr.rel (%p145) target = $region28
        $region27: #{tpu_custom_call.1} parent=23 // pred_region
          %s148 = sand.u32 %s26, 1
          %s149 = scalar_lea.sflag [#allocation3], %s148
          %s150 = sand.u32 %s26, 1
          %s151 = smul.addr %s150, 64
          %s152 = scalar_lea.vmem [#allocation2], %s151
          %s153 = smul.u32 8, %s16
          %s155 = ssub.s32 1024, 1024
          %156 = vsyncadd %s149, %s155
          %s157 = smul.addr %s153, 128
          %s158 = scalar_lea.hbm %s0, %s157
          %s159 = sshll.u32 %s152, 4
          %s160 = int_to_ptr.vmem [resolvable:$true] %s159
          %165 = dma.hbm_to_vmem [thread:$0]  %s158, 1024, %s160, %s149, 128, 128, 8
        $region28: #{tpu_custom_call.1} parent=23 // pred_fallthru
          _
      $region24: #{tpu_custom_call.1} parent=5 // pred_fallthru
        _
      %p166 = scmp.le.s32.totalorder 1, %s16
      %p167 = scmp.lt.s32.totalorder %s16, 3
      %p168 = pnand %p166, %p167
      %p169 = pneg %p168
      // Predicated region
      $region29: #{tpu_custom_call.1} parent=5 // pred_check
        _
      $region30: #{tpu_custom_call.1} parent=5 // pred_check_branch
        %171 = sbr.rel (%p168) target = $region32
      $region31: #{tpu_custom_call.1} parent=5 // pred_region
        %s172 = ssub.s32 %s16, 1
        %s173 = sand.u32 %s29, 1
        %s174 = scalar_lea.sflag [#allocation3], %s173
        %s175 = sand.u32 %s29, 1
        %s176 = smul.addr %s175, 64
        %s177 = scalar_lea.vmem [#allocation2], %s176
        // Predicated region
        $region33: #{tpu_custom_call.1} parent=31 // pred_check
          %p178 = pneg %p42
        $region34: #{tpu_custom_call.1} parent=31 // pred_check_branch
          %180 = sbr.rel (%p178) target = $region36
        $region35: #{tpu_custom_call.1} parent=31 // pred_region
          %181 = dma.done %s174, 1024
        $region36: #{tpu_custom_call.1} parent=31 // pred_fallthru
          _
        // Predicated region
        $region37: #{tpu_custom_call.1} parent=31 // pred_check
          %p182 = pneg %p63
        $region38: #{tpu_custom_call.1} parent=31 // pred_check_branch
          %184 = sbr.rel (%p182) target = $region40
        $region39: #{tpu_custom_call.1} parent=31 // pred_region
          %185 = dma.done [#allocation6], 2048
        $region40: #{tpu_custom_call.1} parent=31 // pred_fallthru
          _
        %s186 = sand.u32 %s29, 1
        %s187 = scalar_lea.sflag [#allocation3], %s186
        %s188 = sand.u32 %s29, 1
        %s189 = smul.addr %s188, 64
        %s190 = scalar_lea.vmem [#allocation2], %s189
        %p191 = pneg %p42
        %p192 = pneg %p39
        %p193 = pneg %p63
        %p194 = pneg %p60
        %p195 = pneg %p84
        %p196 = pneg %p81
        %p197 = pneg %p110
        %p198 = pneg %p107
        %s199 = sand.u32 %s97, 1
        %s200 = scalar_lea.sflag [#allocation4], %s199
        %s201 = sand.u32 %s97, 1
        %s202 = smul.addr %s201, 64
        %s203 = scalar_lea.vmem [#allocation7], %s202
        %s204 = smul.u32 8, %s21
        %s205 = smul.u32 8, %s21
        %v207 = vld [vmem:[%s177] sm:$0xff]
        %v208 = vld [vmem:[%s177 + $0x8] sm:$0xff]
        %v209 = vld [vmem:[%s177 + $0x10] sm:$0xff]
        %v210 = vld [vmem:[%s177 + $0x18] sm:$0xff]
        %v211 = vld [vmem:[%s177 + $0x20] sm:$0xff]
        %v212 = vld [vmem:[%s177 + $0x28] sm:$0xff]
        %v213 = vld [vmem:[%s177 + $0x30] sm:$0xff]
        %v214 = vld [vmem:[%s177 + $0x38] sm:$0xff]
        %v215 = vpack.c.bf16 %v208, %v207
        %v216 = vpack.c.bf16 %v210, %v209
        %v217 = vpack.c.bf16 %v212, %v211
        %v218 = vpack.c.bf16 %v214, %v213
        %v219 = vld [vmem:[#allocation5] sm:$0xff]
        %v220 = vld [vmem:[#allocation5 + $0x8] sm:$0xff]
        %v221 = vld [vmem:[#allocation5 + $0x10] sm:$0xff]
        %v222 = vld [vmem:[#allocation5 + $0x18] sm:$0xff]
        %v223 = vld [vmem:[#allocation5 + $0x20] sm:$0xff]
        %v224 = vld [vmem:[#allocation5 + $0x28] sm:$0xff]
        %v225 = vld [vmem:[#allocation5 + $0x30] sm:$0xff]
        %v226 = vld [vmem:[#allocation5 + $0x38] sm:$0xff]
        %v227 = vld [vmem:[#allocation5 + $0x40] sm:$0xff]
        %v228 = vld [vmem:[#allocation5 + $0x48] sm:$0xff]
        %v229 = vld [vmem:[#allocation5 + $0x50] sm:$0xff]
        %v230 = vld [vmem:[#allocation5 + $0x58] sm:$0xff]
        %v231 = vld [vmem:[#allocation5 + $0x60] sm:$0xff]
        %v232 = vld [vmem:[#allocation5 + $0x68] sm:$0xff]
        %v233 = vld [vmem:[#allocation5 + $0x70] sm:$0xff]
        %v234 = vld [vmem:[#allocation5 + $0x78] sm:$0xff]
        %v235 = vld [vmem:[%s2] sm:$0x3]
        %v237 = vlaneseq
        %v238 = vshrl.u32 %v237, 7
        %v239 = vsub.s32 0, %v238
        %v240 = vrot.slane %v235, %v239
        %v241 = vlaneseq
        %v242 = vshrl.u32 %v241, 7
        %v243 = vsub.s32 1, %v242
        %v244 = vrot.slane %v235, %v243
        %v263 = vunpack.c.l.b16 %v219
        %v264 = vunpack.c.h.b16 %v219
        %v265 = vunpack.c.l.b16 %v220
        %v266 = vunpack.c.h.b16 %v220
        %v267 = vunpack.c.l.b16 %v221
        %v268 = vunpack.c.h.b16 %v221
        %v269 = vunpack.c.l.b16 %v222
        %v270 = vunpack.c.h.b16 %v222
        %v271 = vunpack.c.l.b16 %v223
        %v272 = vunpack.c.h.b16 %v223
        %v273 = vunpack.c.l.b16 %v224
        %v274 = vunpack.c.h.b16 %v224
        %v275 = vunpack.c.l.b16 %v225
        %v276 = vunpack.c.h.b16 %v225
        %v277 = vunpack.c.l.b16 %v226
        %v278 = vunpack.c.h.b16 %v226
        %v279 = vunpack.c.l.b16 %v227
        %v280 = vunpack.c.h.b16 %v227
        %v281 = vunpack.c.l.b16 %v228
        %v282 = vunpack.c.h.b16 %v228
        %v283 = vunpack.c.l.b16 %v229
        %v284 = vunpack.c.h.b16 %v229
        %v285 = vunpack.c.l.b16 %v230
        %v286 = vunpack.c.h.b16 %v230
        %v287 = vunpack.c.l.b16 %v231
        %v288 = vunpack.c.h.b16 %v231
        %v289 = vunpack.c.l.b16 %v232
        %v290 = vunpack.c.h.b16 %v232
        %v291 = vunpack.c.l.b16 %v233
        %v292 = vunpack.c.h.b16 %v233
        %v293 = vunpack.c.l.b16 %v234
        %v294 = vunpack.c.h.b16 %v234
        %v295 = vpack.c.b16 %v265, %v263
        %v296 = vpack.c.b16 %v266, %v264
        %v297 = vpack.c.b16 %v269, %v267
        %v298 = vpack.c.b16 %v270, %v268
        %v299 = vpack.c.b16 %v273, %v271
        %v300 = vpack.c.b16 %v274, %v272
        %v301 = vpack.c.b16 %v277, %v275
        %v302 = vpack.c.b16 %v278, %v276
        %v303 = vpack.c.b16 %v281, %v279
        %v304 = vpack.c.b16 %v282, %v280
        %v305 = vpack.c.b16 %v285, %v283
        %v306 = vpack.c.b16 %v286, %v284
        %v307 = vpack.c.b16 %v289, %v287
        %v308 = vpack.c.b16 %v290, %v288
        %v309 = vpack.c.b16 %v293, %v291
        %v310 = vpack.c.b16 %v294, %v292
        %327 = vmatprep.subr.bf16.mxu0 %v296
        %328 = vmatpush1.bf16.msra.mxu0 %v295
        %329 = vmatprep.subr.bf16.mxu0 %v298
        %330 = vmatpush1.bf16.msra.mxu0 %v297
        %331 = vmatprep.subr.bf16.mxu0 %v300
        %332 = vmatpush1.bf16.msra.mxu0 %v299
        %333 = vmatprep.subr.bf16.mxu0 %v302
        %334 = vmatpush1.bf16.msra.mxu0 %v301
        %335 = vmatprep.subr.bf16.mxu0 %v304
        %336 = vmatpush1.bf16.msra.mxu0 %v303
        %337 = vmatprep.subr.bf16.mxu0 %v306
        %338 = vmatpush1.bf16.msra.mxu0 %v305
        %339 = vmatprep.subr.bf16.mxu0 %v308
        %340 = vmatpush1.bf16.msra.mxu0 %v307
        %341 = vmatprep.subr.bf16.mxu0 %v310
        %342 = vmatpush1.bf16.msra.mxu0 %v309
        %343 = vmatprep.subr.bf16.mxu0 0
        %344 = vmatpush1.bf16.msra.mxu0 0
        %345 = vmatprep.subr.bf16.mxu0 0
        %346 = vmatpush1.bf16.msra.mxu0 0
        %347 = vmatprep.subr.bf16.mxu0 0
        %348 = vmatpush1.bf16.msra.mxu0 0
        %349 = vmatprep.subr.bf16.mxu0 0
        %350 = vmatpush1.bf16.msra.mxu0 0
        %351 = vmatprep.subr.bf16.mxu0 0
        %352 = vmatpush1.bf16.msra.mxu0 0
        %353 = vmatprep.subr.bf16.mxu0 0
        %354 = vmatpush1.bf16.msra.mxu0 0
        %355 = vmatprep.subr.bf16.mxu0 0
        %356 = vmatpush1.bf16.msra.mxu0 0
        %357 = vmatprep.subr.bf16.mxu0 0
        %358 = vmatpush1.bf16.msra.mxu0 0
        %359 = vmatprep.mubr.bf16.mxu0 0
        %360 = vmatmul.mubr.bf16.gmra.mrb[0].mxu0 %v215
        %v361 = vpop.f32.mrb[0].mxu0
        %v362 = vadd.f32 %v240, %v361
        %v363 = vpop.f32.mrb[0].mxu0
        %v364 = vadd.f32 %v244, %v363
        %v365 = vpop.f32.mrb[0].mxu0
        %v366 = vadd.f32 %v240, %v365
        %v367 = vpop.f32.mrb[0].mxu0
        %v368 = vadd.f32 %v244, %v367
        %369 = vmatprep.mubr.bf16.mxu0 0
        %370 = vmatmul.mubr.bf16.gmra.mrb[0].mxu0 %v216
        %v371 = vpop.f32.mrb[0].mxu0
        %v372 = vadd.f32 %v240, %v371
        %v373 = vpop.f32.mrb[0].mxu0
        %v374 = vadd.f32 %v244, %v373
        %v375 = vpop.f32.mrb[0].mxu0
        %v376 = vadd.f32 %v240, %v375
        %v377 = vpop.f32.mrb[0].mxu0
        %v378 = vadd.f32 %v244, %v377
        %379 = vmatprep.mubr.bf16.mxu0 0
        %380 = vmatmul.mubr.bf16.gmra.mrb[0].mxu0 %v217
        %v381 = vpop.f32.mrb[0].mxu0
        %v382 = vadd.f32 %v240, %v381
        %v383 = vpop.f32.mrb[0].mxu0
        %v384 = vadd.f32 %v244, %v383
        %v385 = vpop.f32.mrb[0].mxu0
        %v386 = vadd.f32 %v240, %v385
        %v387 = vpop.f32.mrb[0].mxu0
        %v388 = vadd.f32 %v244, %v387
        %389 = vmatprep.mubr.bf16.mxu0 0
        %390 = vmatmul.mubr.bf16.gmra.mrb[0].mxu0 %v218
        %v391 = vpop.f32.mrb[0].mxu0
        %v392 = vadd.f32 %v240, %v391
        %v393 = vpop.f32.mrb[0].mxu0
        %v394 = vadd.f32 %v244, %v393
        %v395 = vpop.f32.mrb[0].mxu0
        %v396 = vadd.f32 %v240, %v395
        %v397 = vpop.f32.mrb[0].mxu0
        %v398 = vadd.f32 %v244, %v397
        %399 = vdwg.mxu0
        %v400 = vxor.u32 %v364, 2147483648
        %v401 = vxor.u32 %v368, 2147483648
        %v402 = vxor.u32 %v374, 2147483648
        %v403 = vxor.u32 %v378, 2147483648
        %v404 = vxor.u32 %v384, 2147483648
        %v405 = vxor.u32 %v388, 2147483648
        %v406 = vxor.u32 %v394, 2147483648
        %v407 = vxor.u32 %v398, 2147483648
        %v408 = vmul.f32 %v400, 1.442695
        %v409 = vpow.pop %v408
        %v410 = vmul.f32 %v401, 1.442695
        %v411 = vpow.pop %v410
        %v412 = vmul.f32 %v402, 1.442695
        %v413 = vpow.pop %v412
        %v414 = vmul.f32 %v403, 1.442695
        %v415 = vpow.pop %v414
        %v416 = vmul.f32 %v404, 1.442695
        %v417 = vpow.pop %v416
        %v418 = vmul.f32 %v405, 1.442695
        %v419 = vpow.pop %v418
        %v420 = vmul.f32 %v406, 1.442695
        %v421 = vpow.pop %v420
        %v422 = vmul.f32 %v407, 1.442695
        %v423 = vpow.pop %v422
        %v424 = vadd.f32 %v409, 1.0
        %v425 = vadd.f32 %v411, 1.0
        %v426 = vadd.f32 %v413, 1.0
        %v427 = vadd.f32 %v415, 1.0
        %v428 = vadd.f32 %v417, 1.0
        %v429 = vadd.f32 %v419, 1.0
        %v430 = vadd.f32 %v421, 1.0
        %v431 = vadd.f32 %v423, 1.0
        %v432 = vrcp.pop %v424
        %v433 = vmul.f32 1.0, %v432
        %v434 = vrcp.pop %v425
        %v435 = vmul.f32 1.0, %v434
        %v436 = vrcp.pop %v426
        %v437 = vmul.f32 1.0, %v436
        %v438 = vrcp.pop %v427
        %v439 = vmul.f32 1.0, %v438
        %v440 = vrcp.pop %v428
        %v441 = vmul.f32 1.0, %v440
        %v442 = vrcp.pop %v429
        %v443 = vmul.f32 1.0, %v442
        %v444 = vrcp.pop %v430
        %v445 = vmul.f32 1.0, %v444
        %v446 = vrcp.pop %v431
        %v447 = vmul.f32 1.0, %v446
        %v448 = vmax.f32 %v362, 0.0
        %v449 = vmax.f32 %v366, 0.0
        %v450 = vmax.f32 %v372, 0.0
        %v451 = vmax.f32 %v376, 0.0
        %v452 = vmax.f32 %v382, 0.0
        %v453 = vmax.f32 %v386, 0.0
        %v454 = vmax.f32 %v392, 0.0
        %v455 = vmax.f32 %v396, 0.0
        %v456 = vsub.f32 %v448, %v207
        %v457 = vsub.f32 %v449, %v208
        %v458 = vsub.f32 %v450, %v209
        %v459 = vsub.f32 %v451, %v210
        %v460 = vsub.f32 %v452, %v211
        %v461 = vsub.f32 %v453, %v212
        %v462 = vsub.f32 %v454, %v213
        %v463 = vsub.f32 %v455, %v214
        %v464 = vmul.f32 %v433, %v456
        %v465 = vmul.f32 %v435, %v457
        %v466 = vmul.f32 %v437, %v458
        %v467 = vmul.f32 %v439, %v459
        %v468 = vmul.f32 %v441, %v460
        %v469 = vmul.f32 %v443, %v461
        %v470 = vmul.f32 %v445, %v462
        %v471 = vmul.f32 %v447, %v463
        %v472 = vadd.f32 %v207, %v464
        %v473 = vadd.f32 %v208, %v465
        %v474 = vadd.f32 %v209, %v466
        %v475 = vadd.f32 %v210, %v467
        %v476 = vadd.f32 %v211, %v468
        %v477 = vadd.f32 %v212, %v469
        %v478 = vadd.f32 %v213, %v470
        %v479 = vadd.f32 %v214, %v471
        %480 = vst [vmem:[%s203] sm:$0xff] %v472
        %481 = vst [vmem:[%s203 + $0x8] sm:$0xff] %v473
        %482 = vst [vmem:[%s203 + $0x10] sm:$0xff] %v474
        %483 = vst [vmem:[%s203 + $0x18] sm:$0xff] %v475
        %484 = vst [vmem:[%s203 + $0x20] sm:$0xff] %v476
        %485 = vst [vmem:[%s203 + $0x28] sm:$0xff] %v477
        %486 = vst [vmem:[%s203 + $0x30] sm:$0xff] %v478
        %487 = vst [vmem:[%s203 + $0x38] sm:$0xff] %v479
        %s488 = sand.u32 %s97, 1
        %s489 = scalar_lea.sflag [#allocation4], %s488
        %s490 = sand.u32 %s97, 1
        %s491 = smul.addr %s490, 64
        %s492 = scalar_lea.vmem [#allocation7], %s491
        // Predicated region
        $region41: #{tpu_custom_call.1} parent=31 // pred_check
          %p493 = pneg %p107
        $region42: #{tpu_custom_call.1} parent=31 // pred_check_branch
          %495 = sbr.rel (%p493) target = $region44
        $region43: #{tpu_custom_call.1} parent=31 // pred_region
          %s496 = smul.u32 8, %s21
          %s498 = ssub.s32 1024, 1024
          %499 = vsyncadd %s489, %s498
          %s500 = smul.addr %s496, 128
          %s501 = scalar_lea.hbm %s3, %s500
          %s502 = sshll.u32 %s492, 4
          %s503 = int_to_ptr.vmem [resolvable:$true] %s502
          %508 = dma.vmem_to_hbm [thread:$0]  %s503, 1024, %s501, %s489, 128, 128, 8
        $region44: #{tpu_custom_call.1} parent=31 // pred_fallthru
          _
      $region32: #{tpu_custom_call.1} parent=5 // pred_fallthru
        _
      %p509 = scmp.le.s32.totalorder 2, %s16
      // Predicated region
      $region45: #{tpu_custom_call.1} parent=5 // pred_check
        %p510 = pneg %p509
      $region46: #{tpu_custom_call.1} parent=5 // pred_check_branch
        %512 = sbr.rel (%p510) target = $region48
      $region47: #{tpu_custom_call.1} parent=5 // pred_region
        %s513 = ssub.s32 %s16, 2
        // Predicated region
        $region49: #{tpu_custom_call.1} parent=47 // pred_check
          %p514 = pneg %p113
        $region50: #{tpu_custom_call.1} parent=47 // pred_check_branch
          %516 = sbr.rel (%p514) target = $region52
        $region51: #{tpu_custom_call.1} parent=47 // pred_region
          %s517 = sand.u32 %s98, 1
          %s518 = scalar_lea.sflag [#allocation4], %s517
          %s519 = sand.u32 %s98, 1
          %s520 = smul.addr %s519, 64
          %s521 = scalar_lea.vmem [#allocation7], %s520
          %522 = dma.done %s518, 1024
        $region52: #{tpu_custom_call.1} parent=47 // pred_fallthru
          _
      $region48: #{tpu_custom_call.1} parent=5 // pred_fallthru
        _
    $region6: #{tpu_custom_call.1} parent=1 // loop_footer
      %s20 = sadd.s32 1, %s16
    $region7: #{tpu_custom_call.1} parent=1 // loop_footer_branch
      %15 = sbr.rel target = $region3
    $region8: #{tpu_custom_call.1} parent=1 // loop_exit
      _
    %523 = vsyncpa [#allocation3], 1
    %s524 = scalar_lea.sflag [#allocation3], 1
    %525 = vsyncpa %s524, 1
    %526 = vsyncpa [#allocation6], 1
    %527 = vsyncpa [#allocation4], 1
    %s528 = scalar_lea.sflag [#allocation4], 1
    %529 = vsyncpa %s528, 1

</llo_original>
